<compile_context>
chip_gen: v7x
topology: tpu7x:2x2x1
jax: 0.10.0
libtpu: 0.0.40
codegen_flags: <defaults>
</compile_context>

<pallas_src>
import functools

import jax
import jax.numpy as jnp
import numpy as np
from jax import lax
from jax.experimental import pallas as pl
from jax.experimental.pallas import tpu as pltpu

LANE = 128
SUB = 8
SC_ROWS = 64          # sub-chunk rows per fori_loop iteration (32 KiB/input, f32)
NCORES = 2            # leading "parallel" grid axis (v7x megacore)


def _round_up(a, b):
    return (a + b - 1) // b * b


def _target_block_rows():
    """Rows of (., 128) per grid step, per input.

    v5e: 4096 rows = 2 MiB/input -> 3 inputs x 2 buffers = 12 MiB < 16 MiB scoped default.
    v6e/v7x: 8192 rows = 4 MiB/input -> 24 MiB working set < 32 MiB scoped default.
    """
    try:
        kind = jax.devices()[0].device_kind.lower()
    except Exception:  # pragma: no cover
        kind = ""
    return 4096 if "v5" in kind else 8192


# ----------------------------------------------------------------------------
# Fused streaming kernel: SSE(recon, x) + min/max(x) + min/max(x_final).
# ----------------------------------------------------------------------------
def _accumulate(recon_ref, x_ref, xf_ref,
                sse_ref, xmin_ref, xmax_ref, fmin_ref, fmax_ref,
                row0, n_sub, sc, t_real, masked):
    """Walk the (br, 128) block in sc-row sub-chunks, folding SSE / min / max into
    (8, 128) vector partials, then merge them into the resident output refs."""

    def body(i, carry):
        sse, xmn, xmx, fmn, fmx = carry
        r0 = pl.multiple_of(i * sc, sc)
        rv = recon_ref[pl.ds(r0, sc), :].astype(jnp.float32)
        xv = x_ref[pl.ds(r0, sc), :].astype(jnp.float32)
        fv = xf_ref[pl.ds(r0, sc), :].astype(jnp.float32)
        if masked:
            # Element-index mask: kills the lane-padding tail, the partial last
            # row-block, and any "ghost" block created by the NCORES split.
            gr = row0 + i * sc + lax.broadcasted_iota(jnp.int32, (sc, LANE), 0)
            ln = lax.broadcasted_iota(jnp.int32, (sc, LANE), 1)
            valid = gr * LANE + ln < t_real
            d = jnp.where(valid, rv - xv, 0.0)
            x_lo = jnp.where(valid, xv, jnp.inf)
            x_hi = jnp.where(valid, xv, -jnp.inf)
            f_lo = jnp.where(valid, fv, jnp.inf)
            f_hi = jnp.where(valid, fv, -jnp.inf)
        else:
            d = rv - xv
            x_lo = x_hi = xv
            f_lo = f_hi = fv
        grp = (sc // SUB, SUB, LANE)
        sse = sse + jnp.sum((d * d).reshape(grp), axis=0)
        xmn = jnp.minimum(xmn, jnp.min(x_lo.reshape(grp), axis=0))
        xmx = jnp.maximum(xmx, jnp.max(x_hi.reshape(grp), axis=0))
        fmn = jnp.minimum(fmn, jnp.min(f_lo.reshape(grp), axis=0))
        fmx = jnp.maximum(fmx, jnp.max(f_hi.reshape(grp), axis=0))
        return sse, xmn, xmx, fmn, fmx

    init = (jnp.zeros((SUB, LANE), jnp.float32),
            jnp.full((SUB, LANE), jnp.inf, jnp.float32),
            jnp.full((SUB, LANE), -jnp.inf, jnp.float32),
            jnp.full((SUB, LANE), jnp.inf, jnp.float32),
            jnp.full((SUB, LANE), -jnp.inf, jnp.float32))
    sse, xmn, xmx, fmn, fmx = lax.fori_loop(0, n_sub, body, init)

    sse_ref[...] += sse
    xmin_ref[...] = jnp.minimum(xmin_ref[...], xmn)
    xmax_ref[...] = jnp.maximum(xmax_ref[...], xmx)
    fmin_ref[...] = jnp.minimum(fmin_ref[...], fmn)
    fmax_ref[...] = jnp.maximum(fmax_ref[...], fmx)


def _loss_stats_kernel(recon_ref, x_ref, xf_ref,
                       sse_ref, xmin_ref, xmax_ref, fmin_ref, fmax_ref,
                       *, br, sc, t_real):
    c = pl.program_id(0)
    s = pl.program_id(1)
    steps = pl.num_programs(1)

    @pl.when(s == 0)
    def _():
        sse_ref[...] = jnp.zeros(sse_ref.shape, jnp.float32)
        xmin_ref[...] = jnp.full(xmin_ref.shape, jnp.inf, jnp.float32)
        xmax_ref[...] = jnp.full(xmax_ref.shape, -jnp.inf, jnp.float32)
        fmin_ref[...] = jnp.full(fmin_ref.shape, jnp.inf, jnp.float32)
        fmax_ref[...] = jnp.full(fmax_ref.shape, -jnp.inf, jnp.float32)

    b = c * steps + s                       # logical row-block index (may be a ghost)
    row0 = b * br
    n_sub = br // sc
    edge = (row0 + br) * LANE > t_real      # only edge / ghost blocks need the mask

    args = (recon_ref, x_ref, xf_ref,
            sse_ref, xmin_ref, xmax_ref, fmin_ref, fmax_ref,
            row0, n_sub, sc, t_real)

    @pl.when(edge)
    def _():
        _accumulate(*args, masked=True)

    @pl.when(jnp.logical_not(edge))
    def _():
        _accumulate(*args, masked=False)


def _prep2d(a, rows_p):
    flat = a.reshape(-1)                    # contiguous -> free reshape, no copy
    pad = rows_p * LANE - flat.size
    if pad:
        # Only taken when the element count is not a multiple of 8*128 (never for
        # typical image shapes); pad values are masked out in-kernel anyway.
        flat = jnp.pad(flat, (0, pad))
    return flat.reshape(rows_p, LANE)


def loss_stats(reconstructed_x, x, x_final):
    """One streaming pass over HBM: per-core (8,128) partials for
    sum((recon-x)^2), min(x), max(x), min(x_final), max(x_final)."""
    assert reconstructed_x.size == x.size == x_final.size
    t_real = int(x.size)

    rows = pl.cdiv(t_real, LANE)
    rows_p = _round_up(max(rows, SUB), SUB)

    target = _target_block_rows()
    if rows_p <= SC_ROWS:
        br = sc = rows_p
    else:
        sc = SC_ROWS
        br = min(target, rows_p)
        br -= br % sc                       # multiple of sc, never exceeds rows_p

    nblocks = pl.cdiv(rows_p, br)
    nc = min(NCORES, nblocks)
    steps = pl.cdiv(nblocks, nc)
    last = nblocks - 1

    def in_idx(c, s):
        # Clamp so ghost grid steps re-read the last real block (their
        # contribution is masked to zero in-kernel).
        return (jnp.minimum(c * steps + s, last), 0)

    def out_idx(c, s):
        return (c, 0)                       # per-core resident partial block

    kernel = functools.partial(_loss_stats_kernel, br=br, sc=sc, t_real=t_real)
    part = jax.ShapeDtypeStruct((nc * SUB, LANE), jnp.float32)

    return pl.pallas_call(
        kernel,
        out_shape=(part,) * 5,
        grid_spec=pltpu.PrefetchScalarGridSpec(
            num_scalar_prefetch=0,
            grid=(nc, steps),
            in_specs=[pl.BlockSpec((br, LANE), in_idx)] * 3,
            out_specs=[pl.BlockSpec((SUB, LANE), out_idx)] * 5,
        ),
        compiler_params=pltpu.CompilerParams(
            dimension_semantics=("parallel", "arbitrary")),
    )(_prep2d(reconstructed_x, rows_p),
      _prep2d(x, rows_p),
      _prep2d(x_final, rows_p))


# ----------------------------------------------------------------------------
# Module forward: ElevationVAELoss(data_length, batch_size).forward(...)
# ----------------------------------------------------------------------------
def elevation_vae_loss(reconstructed_x, x_final, x, mu, logvar, lpips, loss_weight):
    sse_p, xmin_p, xmax_p, fmin_p, fmax_p = loss_stats(reconstructed_x, x, x_final)

    t = reconstructed_x.size
    mse_loss = jnp.sum(sse_p) / jnp.float32(t)          # MSELoss(reduction='mean')

    x_min, x_max = jnp.min(xmin_p), jnp.max(xmax_p)
    f_min, f_max = jnp.min(fmin_p), jnp.max(fmax_p)

    # normalize_tensor_01 + 1->3 channel repeat, left to XLA so it fuses into the
    # LPIPS front-end instead of writing full normalized tensors back to HBM.
    # TODO(synk): with a real pretrained LPIPS net, verify in the HLO that the
    # broadcast/normalize fuse and are not re-materialized as copies.
    xf_norm = (x_final - f_min) / (f_max - f_min + 1e-6)
    x_norm = (x - x_min) / (x_max - x_min + 1e-6)

    def _rep3(tn):
        n, c, h, w = tn.shape
        if c == 1:
            return jnp.broadcast_to(tn, (n, 3, h, w))
        return jnp.tile(tn, (1, 3, 1, 1))

    lpips_loss = lpips(_rep3(xf_norm), _rep3(x_norm))   # external callable (plain JAX)

    # KL term: N*L elements -- trivially cheap, plain JAX (per perf review).
    kl_div = -0.5 * jnp.sum(1.0 + logvar - mu * mu - jnp.exp(logvar))

    return kl_div + (mse_loss + lpips_loss * 100.0) * loss_weight


if __name__ == "__main__":
    key = jax.random.PRNGKey(0)
    k1, k2, k3, k4, k5 = jax.random.split(key, 5)

    N, C, H, W, L = 2, 1, 16, 16, 32
    reconstructed_x = jax.random.normal(k1, (N, C, H, W), jnp.float32)
    x_final = jax.random.normal(k2, (N, C, H, W), jnp.float32)
    x = jax.random.normal(k3, (N, C, H, W), jnp.float32)
    mu = 0.5 * jax.random.normal(k4, (N, L), jnp.float32)
    logvar = 0.1 * jax.random.normal(k5, (N, L), jnp.float32)

    data_length, batch_size = 100, N
    loss_weight = float(data_length) / float(batch_size)

    # TODO(synk): real LPIPS is a pretrained perceptual network passed in by the
    # caller (as in the PyTorch module); a deterministic surrogate is used here.
    lpips_surrogate = lambda a, b: jnp.mean((a - b) ** 2)

    loss = elevation_vae_loss(reconstructed_x, x_final, x, mu, logvar,
                              lpips_surrogate, loss_weight)
    loss = jax.block_until_ready(loss)

    # Pure-JAX reference for correctness.
    def _norm01(tn):
        return (tn - jnp.min(tn)) / (jnp.max(tn) - jnp.min(tn) + 1e-6)

    rr = jnp.tile(_norm01(x_final), (1, 3, 1, 1))
    xr = jnp.tile(_norm01(x), (1, 3, 1, 1))
    lp = lpips_surrogate(rr, xr)
    mse_ref = jnp.mean((reconstructed_x - x) ** 2)
    kl_ref = -0.5 * jnp.sum(1.0 + logvar - mu ** 2 - jnp.exp(logvar))
    ref = kl_ref + (mse_ref + lp * 100.0) * loss_weight

    np.testing.assert_allclose(np.array(loss), np.array(ref), rtol=1e-4, atol=1e-3)
    print("KERNEL_OK")
</pallas_src>

<mosaic_0001>
module attributes {stable_mosaic.version = 11 : i64} {
  func.func @_loss_stats_kernel(%arg0: i32, %arg1: i32, %arg2: memref<8x128xf32, #tpu.memory_space<vmem>>, %arg3: memref<8x128xf32, #tpu.memory_space<vmem>>, %arg4: memref<8x128xf32, #tpu.memory_space<vmem>>, %arg5: memref<8x128xf32, #tpu.memory_space<vmem>>, %arg6: memref<8x128xf32, #tpu.memory_space<vmem>>, %arg7: memref<8x128xf32, #tpu.memory_space<vmem>>, %arg8: memref<8x128xf32, #tpu.memory_space<vmem>>, %arg9: memref<8x128xf32, #tpu.memory_space<vmem>>) attributes {dimension_semantics = [#tpu.dimension_semantics<parallel>, #tpu.dimension_semantics<arbitrary>], iteration_bounds = array<i64: 1, 1>, scalar_prefetch = 0 : i64, scratch_operands = 0 : i64, tpu.core_type = #tpu.core_type<tc>, window_params = [{transform_indices = @transform_0, window_bounds = array<i64: 8, 128>}, {transform_indices = @transform_1, window_bounds = array<i64: 8, 128>}, {transform_indices = @transform_2, window_bounds = array<i64: 8, 128>}, {transform_indices = @transform_3, window_bounds = array<i64: 8, 128>}, {transform_indices = @transform_4, window_bounds = array<i64: 8, 128>}, {transform_indices = @transform_5, window_bounds = array<i64: 8, 128>}, {transform_indices = @transform_6, window_bounds = array<i64: 8, 128>}, {transform_indices = @transform_7, window_bounds = array<i64: 8, 128>}]} {
    %c0_i32 = arith.constant 0 : i32
    %0 = arith.cmpi eq, %arg1, %c0_i32 : i32
    %1 = arith.extui %0 : i1 to i32
    %c0_i32_0 = arith.constant 0 : i32
    %2 = arith.cmpi ne, %1, %c0_i32_0 : i32
    scf.if %2 {
      %cst = arith.constant 0.000000e+00 : f32
      %14 = vector.broadcast %cst : f32 to vector<8x128xf32>
      %c0 = arith.constant 0 : index
      %c0_4 = arith.constant 0 : index
      %15 = vector.load %arg5[%c0, %c0_4] : memref<8x128xf32, #tpu.memory_space<vmem>>, vector<8x128xf32>
      tpu.vector_store %arg5[%c0, %c0_4], %14 {strides = array<i32>} : memref<8x128xf32, #tpu.memory_space<vmem>>, vector<8x128xf32>,
      %cst_5 = arith.constant 0x7F800000 : f32
      %16 = vector.broadcast %cst_5 : f32 to vector<8x128xf32>
      %c0_6 = arith.constant 0 : index
      %c0_7 = arith.constant 0 : index
      %17 = vector.load %arg6[%c0_6, %c0_7] : memref<8x128xf32, #tpu.memory_space<vmem>>, vector<8x128xf32>
      tpu.vector_store %arg6[%c0_6, %c0_7], %16 {strides = array<i32>} : memref<8x128xf32, #tpu.memory_space<vmem>>, vector<8x128xf32>,
      %cst_8 = arith.constant 0xFF800000 : f32
      %18 = vector.broadcast %cst_8 : f32 to vector<8x128xf32>
      %c0_9 = arith.constant 0 : index
      %c0_10 = arith.constant 0 : index
      %19 = vector.load %arg7[%c0_9, %c0_10] : memref<8x128xf32, #tpu.memory_space<vmem>>, vector<8x128xf32>
      tpu.vector_store %arg7[%c0_9, %c0_10], %18 {strides = array<i32>} : memref<8x128xf32, #tpu.memory_space<vmem>>, vector<8x128xf32>,
      %cst_11 = arith.constant 0x7F800000 : f32
      %20 = vector.broadcast %cst_11 : f32 to vector<8x128xf32>
      %c0_12 = arith.constant 0 : index
      %c0_13 = arith.constant 0 : index
      %21 = vector.load %arg8[%c0_12, %c0_13] : memref<8x128xf32, #tpu.memory_space<vmem>>, vector<8x128xf32>
      tpu.vector_store %arg8[%c0_12, %c0_13], %20 {strides = array<i32>} : memref<8x128xf32, #tpu.memory_space<vmem>>, vector<8x128xf32>,
      %cst_14 = arith.constant 0xFF800000 : f32
      %22 = vector.broadcast %cst_14 : f32 to vector<8x128xf32>
      %c0_15 = arith.constant 0 : index
      %c0_16 = arith.constant 0 : index
      %23 = vector.load %arg9[%c0_15, %c0_16] : memref<8x128xf32, #tpu.memory_space<vmem>>, vector<8x128xf32>
      tpu.vector_store %arg9[%c0_15, %c0_16], %22 {strides = array<i32>} : memref<8x128xf32, #tpu.memory_space<vmem>>, vector<8x128xf32>,
    } else {
    }
    %c1_i32 = arith.constant 1 : i32
    %3 = arith.muli %arg0, %c1_i32 : i32
    %4 = arith.addi %3, %arg1 : i32
    %c8_i32 = arith.constant 8 : i32
    %5 = arith.muli %4, %c8_i32 : i32
    %c8_i32_1 = arith.constant 8 : i32
    %6 = arith.addi %5, %c8_i32_1 : i32
    %c128_i32 = arith.constant 128 : i32
    %7 = arith.muli %6, %c128_i32 : i32
    %c512_i32 = arith.constant 512 : i32
    %8 = arith.cmpi sgt, %7, %c512_i32 : i32
    %9 = arith.extui %8 : i1 to i32
    %c0_i32_2 = arith.constant 0 : i32
    %10 = arith.cmpi ne, %9, %c0_i32_2 : i32
    scf.if %10 {
      %cst = arith.constant 0.000000e+00 : f32
      %14 = vector.broadcast %cst : f32 to vector<8x128xf32>
      %cst_4 = arith.constant 0x7F800000 : f32
      %15 = vector.broadcast %cst_4 : f32 to vector<8x128xf32>
      %cst_5 = arith.constant 0xFF800000 : f32
      %16 = vector.broadcast %cst_5 : f32 to vector<8x128xf32>
      %cst_6 = arith.constant 0x7F800000 : f32
      %17 = vector.broadcast %cst_6 : f32 to vector<8x128xf32>
      %cst_7 = arith.constant 0xFF800000 : f32
      %18 = vector.broadcast %cst_7 : f32 to vector<8x128xf32>
      %c0_i32_8 = arith.constant 0 : i32
      %c8_i32_9 = arith.constant 8 : i32
      %19 = arith.muli %c0_i32_8, %c8_i32_9 : i32
      %20 = tpu.assume_multiple %19, 8 : i32
      %21 = arith.index_cast %20 : i32 to index
      %c0 = arith.constant 0 : index
      %22 = vector.load %arg2[%21, %c0] : memref<8x128xf32, #tpu.memory_space<vmem>>, vector<8x128xf32>
      %23 = arith.index_cast %20 : i32 to index
      %c0_10 = arith.constant 0 : index
      %24 = vector.load %arg3[%23, %c0_10] : memref<8x128xf32, #tpu.memory_space<vmem>>, vector<8x128xf32>
      %25 = arith.index_cast %20 : i32 to index
      %c0_11 = arith.constant 0 : index
      %26 = vector.load %arg4[%25, %c0_11] : memref<8x128xf32, #tpu.memory_space<vmem>>, vector<8x128xf32>
      %c8_i32_12 = arith.constant 8 : i32
      %27 = arith.muli %c0_i32_8, %c8_i32_12 : i32
      %28 = arith.addi %5, %27 : i32
      %29 = tpu.iota {dimensions = array<i32: 0>} : vector<8x128xi32>
      %30 = vector.broadcast %28 : i32 to vector<8x128xi32>
      %31 = arith.addi %30, %29 : vector<8x128xi32>
      %32 = tpu.iota {dimensions = array<i32: 1>} : vector<8x128xi32>
      %c128_i32_13 = arith.constant 128 : i32
      %33 = vector.broadcast %c128_i32_13 : i32 to vector<8x128xi32>
      %34 = arith.muli %31, %33 : vector<8x128xi32>
      %35 = arith.addi %34, %32 : vector<8x128xi32>
      %c512_i32_14 = arith.constant 512 : i32
      %36 = vector.broadcast %c512_i32_14 : i32 to vector<8x128xi32>
      %37 = arith.cmpi slt, %35, %36 : vector<8x128xi32>
      %38 = arith.subf %22, %24 : vector<8x128xf32>
      %cst_15 = arith.constant 0.000000e+00 : f32
      %39 = vector.broadcast %cst_15 : f32 to vector<8x128xf32>
      %40 = arith.select %37, %38, %39 : vector<8x128xi1>, vector<8x128xf32>
      %cst_16 = arith.constant 0x7F800000 : f32
      %41 = vector.broadcast %cst_16 : f32 to vector<8x128xf32>
      %42 = arith.select %37, %24, %41 : vector<8x128xi1>, vector<8x128xf32>
      %cst_17 = arith.constant 0xFF800000 : f32
      %43 = vector.broadcast %cst_17 : f32 to vector<8x128xf32>
      %44 = arith.select %37, %24, %43 : vector<8x128xi1>, vector<8x128xf32>
      %cst_18 = arith.constant 0x7F800000 : f32
      %45 = vector.broadcast %cst_18 : f32 to vector<8x128xf32>
      %46 = arith.select %37, %26, %45 : vector<8x128xi1>, vector<8x128xf32>
      %cst_19 = arith.constant 0xFF800000 : f32
      %47 = vector.broadcast %cst_19 : f32 to vector<8x128xf32>
      %48 = arith.select %37, %26, %47 : vector<8x128xi1>, vector<8x128xf32>
      %49 = arith.mulf %40, %40 : vector<8x128xf32>
      %50 = vector.shape_cast %49 : vector<8x128xf32> to vector<1x8x128xf32>
      %cst_20 = arith.constant dense<0.000000e+00> : vector<8x128xf32>
      %51 = vector.multi_reduction <add>, %50, %cst_20 [0] : vector<1x8x128xf32> to vector<8x128xf32>
      %52 = arith.addf %14, %51 : vector<8x128xf32>
      %53 = vector.shape_cast %42 : vector<8x128xf32> to vector<1x8x128xf32>
      %cst_21 = arith.constant dense<0x7F800000> : vector<8x128xf32>
      %54 = vector.multi_reduction <minimumf>, %53, %cst_21 [0] : vector<1x8x128xf32> to vector<8x128xf32>
      %55 = arith.minimumf %15, %54 : vector<8x128xf32>
      %56 = vector.shape_cast %44 : vector<8x128xf32> to vector<1x8x128xf32>
      %cst_22 = arith.constant dense<0xFF800000> : vector<8x128xf32>
      %57 = vector.multi_reduction <maximumf>, %56, %cst_22 [0] : vector<1x8x128xf32> to vector<8x128xf32>
      %58 = arith.maximumf %16, %57 : vector<8x128xf32>
      %59 = vector.shape_cast %46 : vector<8x128xf32> to vector<1x8x128xf32>
      %cst_23 = arith.constant dense<0x7F800000> : vector<8x128xf32>
      %60 = vector.multi_reduction <minimumf>, %59, %cst_23 [0] : vector<1x8x128xf32> to vector<8x128xf32>
      %61 = arith.minimumf %17, %60 : vector<8x128xf32>
      %62 = vector.shape_cast %48 : vector<8x128xf32> to vector<1x8x128xf32>
      %cst_24 = arith.constant dense<0xFF800000> : vector<8x128xf32>
      %63 = vector.multi_reduction <maximumf>, %62, %cst_24 [0] : vector<1x8x128xf32> to vector<8x128xf32>
      %64 = arith.maximumf %18, %63 : vector<8x128xf32>
      %c1_i32_25 = arith.constant 1 : i32
      %c0_26 = arith.constant 0 : index
      %c0_27 = arith.constant 0 : index
      %65 = vector.load %arg5[%c0_26, %c0_27] : memref<8x128xf32, #tpu.memory_space<vmem>>, vector<8x128xf32>
      %66 = arith.addf %65, %52 : vector<8x128xf32>
      %c0_28 = arith.constant 0 : index
      %c0_29 = arith.constant 0 : index
      %67 = vector.load %arg5[%c0_28, %c0_29] : memref<8x128xf32, #tpu.memory_space<vmem>>, vector<8x128xf32>
      tpu.vector_store %arg5[%c0_28, %c0_29], %66 {strides = array<i32>} : memref<8x128xf32, #tpu.memory_space<vmem>>, vector<8x128xf32>,
      %c0_30 = arith.constant 0 : index
      %c0_31 = arith.constant 0 : index
      %68 = vector.load %arg6[%c0_30, %c0_31] : memref<8x128xf32, #tpu.memory_space<vmem>>, vector<8x128xf32>
      %69 = arith.minimumf %68, %55 : vector<8x128xf32>
      %c0_32 = arith.constant 0 : index
      %c0_33 = arith.constant 0 : index
      %70 = vector.load %arg6[%c0_32, %c0_33] : memref<8x128xf32, #tpu.memory_space<vmem>>, vector<8x128xf32>
      tpu.vector_store %arg6[%c0_32, %c0_33], %69 {strides = array<i32>} : memref<8x128xf32, #tpu.memory_space<vmem>>, vector<8x128xf32>,
      %c0_34 = arith.constant 0 : index
      %c0_35 = arith.constant 0 : index
      %71 = vector.load %arg7[%c0_34, %c0_35] : memref<8x128xf32, #tpu.memory_space<vmem>>, vector<8x128xf32>
      %72 = arith.maximumf %71, %58 : vector<8x128xf32>
      %c0_36 = arith.constant 0 : index
      %c0_37 = arith.constant 0 : index
      %73 = vector.load %arg7[%c0_36, %c0_37] : memref<8x128xf32, #tpu.memory_space<vmem>>, vector<8x128xf32>
      tpu.vector_store %arg7[%c0_36, %c0_37], %72 {strides = array<i32>} : memref<8x128xf32, #tpu.memory_space<vmem>>, vector<8x128xf32>,
      %c0_38 = arith.constant 0 : index
      %c0_39 = arith.constant 0 : index
      %74 = vector.load %arg8[%c0_38, %c0_39] : memref<8x128xf32, #tpu.memory_space<vmem>>, vector<8x128xf32>
      %75 = arith.minimumf %74, %61 : vector<8x128xf32>
      %c0_40 = arith.constant 0 : index
      %c0_41 = arith.constant 0 : index
      %76 = vector.load %arg8[%c0_40, %c0_41] : memref<8x128xf32, #tpu.memory_space<vmem>>, vector<8x128xf32>
      tpu.vector_store %arg8[%c0_40, %c0_41], %75 {strides = array<i32>} : memref<8x128xf32, #tpu.memory_space<vmem>>, vector<8x128xf32>,
      %c0_42 = arith.constant 0 : index
      %c0_43 = arith.constant 0 : index
      %77 = vector.load %arg9[%c0_42, %c0_43] : memref<8x128xf32, #tpu.memory_space<vmem>>, vector<8x128xf32>
      %78 = arith.maximumf %77, %64 : vector<8x128xf32>
      %c0_44 = arith.constant 0 : index
      %c0_45 = arith.constant 0 : index
      %79 = vector.load %arg9[%c0_44, %c0_45] : memref<8x128xf32, #tpu.memory_space<vmem>>, vector<8x128xf32>
      tpu.vector_store %arg9[%c0_44, %c0_45], %78 {strides = array<i32>} : memref<8x128xf32, #tpu.memory_space<vmem>>, vector<8x128xf32>,
    } else {
    }
    %true = arith.constant true
    %11 = arith.xori %8, %true : i1
    %12 = arith.extui %11 : i1 to i32
    %c0_i32_3 = arith.constant 0 : i32
    %13 = arith.cmpi ne, %12, %c0_i32_3 : i32
    scf.if %13 {
      %cst = arith.constant 0.000000e+00 : f32
      %14 = vector.broadcast %cst : f32 to vector<8x128xf32>
      %cst_4 = arith.constant 0x7F800000 : f32
      %15 = vector.broadcast %cst_4 : f32 to vector<8x128xf32>
      %cst_5 = arith.constant 0xFF800000 : f32
      %16 = vector.broadcast %cst_5 : f32 to vector<8x128xf32>
      %cst_6 = arith.constant 0x7F800000 : f32
      %17 = vector.broadcast %cst_6 : f32 to vector<8x128xf32>
      %cst_7 = arith.constant 0xFF800000 : f32
      %18 = vector.broadcast %cst_7 : f32 to vector<8x128xf32>
      %c0_i32_8 = arith.constant 0 : i32
      %c8_i32_9 = arith.constant 8 : i32
      %19 = arith.muli %c0_i32_8, %c8_i32_9 : i32
      %20 = tpu.assume_multiple %19, 8 : i32
      %21 = arith.index_cast %20 : i32 to index
      %c0 = arith.constant 0 : index
      %22 = vector.load %arg2[%21, %c0] : memref<8x128xf32, #tpu.memory_space<vmem>>, vector<8x128xf32>
      %23 = arith.index_cast %20 : i32 to index
      %c0_10 = arith.constant 0 : index
      %24 = vector.load %arg3[%23, %c0_10] : memref<8x128xf32, #tpu.memory_space<vmem>>, vector<8x128xf32>
      %25 = arith.index_cast %20 : i32 to index
      %c0_11 = arith.constant 0 : index
      %26 = vector.load %arg4[%25, %c0_11] : memref<8x128xf32, #tpu.memory_space<vmem>>, vector<8x128xf32>
      %27 = arith.subf %22, %24 : vector<8x128xf32>
      %28 = arith.mulf %27, %27 : vector<8x128xf32>
      %29 = vector.shape_cast %28 : vector<8x128xf32> to vector<1x8x128xf32>
      %cst_12 = arith.constant dense<0.000000e+00> : vector<8x128xf32>
      %30 = vector.multi_reduction <add>, %29, %cst_12 [0] : vector<1x8x128xf32> to vector<8x128xf32>
      %31 = arith.addf %14, %30 : vector<8x128xf32>
      %32 = vector.shape_cast %24 : vector<8x128xf32> to vector<1x8x128xf32>
      %cst_13 = arith.constant dense<0x7F800000> : vector<8x128xf32>
      %33 = vector.multi_reduction <minimumf>, %32, %cst_13 [0] : vector<1x8x128xf32> to vector<8x128xf32>
      %34 = arith.minimumf %15, %33 : vector<8x128xf32>
      %35 = vector.shape_cast %24 : vector<8x128xf32> to vector<1x8x128xf32>
      %cst_14 = arith.constant dense<0xFF800000> : vector<8x128xf32>
      %36 = vector.multi_reduction <maximumf>, %35, %cst_14 [0] : vector<1x8x128xf32> to vector<8x128xf32>
      %37 = arith.maximumf %16, %36 : vector<8x128xf32>
      %38 = vector.shape_cast %26 : vector<8x128xf32> to vector<1x8x128xf32>
      %cst_15 = arith.constant dense<0x7F800000> : vector<8x128xf32>
      %39 = vector.multi_reduction <minimumf>, %38, %cst_15 [0] : vector<1x8x128xf32> to vector<8x128xf32>
      %40 = arith.minimumf %17, %39 : vector<8x128xf32>
      %41 = vector.shape_cast %26 : vector<8x128xf32> to vector<1x8x128xf32>
      %cst_16 = arith.constant dense<0xFF800000> : vector<8x128xf32>
      %42 = vector.multi_reduction <maximumf>, %41, %cst_16 [0] : vector<1x8x128xf32> to vector<8x128xf32>
      %43 = arith.maximumf %18, %42 : vector<8x128xf32>
      %c1_i32_17 = arith.constant 1 : i32
      %c0_18 = arith.constant 0 : index
      %c0_19 = arith.constant 0 : index
      %44 = vector.load %arg5[%c0_18, %c0_19] : memref<8x128xf32, #tpu.memory_space<vmem>>, vector<8x128xf32>
      %45 = arith.addf %44, %31 : vector<8x128xf32>
      %c0_20 = arith.constant 0 : index
      %c0_21 = arith.constant 0 : index
      %46 = vector.load %arg5[%c0_20, %c0_21] : memref<8x128xf32, #tpu.memory_space<vmem>>, vector<8x128xf32>
      tpu.vector_store %arg5[%c0_20, %c0_21], %45 {strides = array<i32>} : memref<8x128xf32, #tpu.memory_space<vmem>>, vector<8x128xf32>,
      %c0_22 = arith.constant 0 : index
      %c0_23 = arith.constant 0 : index
      %47 = vector.load %arg6[%c0_22, %c0_23] : memref<8x128xf32, #tpu.memory_space<vmem>>, vector<8x128xf32>
      %48 = arith.minimumf %47, %34 : vector<8x128xf32>
      %c0_24 = arith.constant 0 : index
      %c0_25 = arith.constant 0 : index
      %49 = vector.load %arg6[%c0_24, %c0_25] : memref<8x128xf32, #tpu.memory_space<vmem>>, vector<8x128xf32>
      tpu.vector_store %arg6[%c0_24, %c0_25], %48 {strides = array<i32>} : memref<8x128xf32, #tpu.memory_space<vmem>>, vector<8x128xf32>,
      %c0_26 = arith.constant 0 : index
      %c0_27 = arith.constant 0 : index
      %50 = vector.load %arg7[%c0_26, %c0_27] : memref<8x128xf32, #tpu.memory_space<vmem>>, vector<8x128xf32>
      %51 = arith.maximumf %50, %37 : vector<8x128xf32>
      %c0_28 = arith.constant 0 : index
      %c0_29 = arith.constant 0 : index
      %52 = vector.load %arg7[%c0_28, %c0_29] : memref<8x128xf32, #tpu.memory_space<vmem>>, vector<8x128xf32>
      tpu.vector_store %arg7[%c0_28, %c0_29], %51 {strides = array<i32>} : memref<8x128xf32, #tpu.memory_space<vmem>>, vector<8x128xf32>,
      %c0_30 = arith.constant 0 : index
      %c0_31 = arith.constant 0 : index
      %53 = vector.load %arg8[%c0_30, %c0_31] : memref<8x128xf32, #tpu.memory_space<vmem>>, vector<8x128xf32>
      %54 = arith.minimumf %53, %40 : vector<8x128xf32>
      %c0_32 = arith.constant 0 : index
      %c0_33 = arith.constant 0 : index
      %55 = vector.load %arg8[%c0_32, %c0_33] : memref<8x128xf32, #tpu.memory_space<vmem>>, vector<8x128xf32>
      tpu.vector_store %arg8[%c0_32, %c0_33], %54 {strides = array<i32>} : memref<8x128xf32, #tpu.memory_space<vmem>>, vector<8x128xf32>,
      %c0_34 = arith.constant 0 : index
      %c0_35 = arith.constant 0 : index
      %56 = vector.load %arg9[%c0_34, %c0_35] : memref<8x128xf32, #tpu.memory_space<vmem>>, vector<8x128xf32>
      %57 = arith.maximumf %56, %43 : vector<8x128xf32>
      %c0_36 = arith.constant 0 : index
      %c0_37 = arith.constant 0 : index
      %58 = vector.load %arg9[%c0_36, %c0_37] : memref<8x128xf32, #tpu.memory_space<vmem>>, vector<8x128xf32>
      tpu.vector_store %arg9[%c0_36, %c0_37], %57 {strides = array<i32>} : memref<8x128xf32, #tpu.memory_space<vmem>>, vector<8x128xf32>,
    } else {
    }
    return
  }
  func.func @transform_0(%arg0: i32, %arg1: i32) -> (i32, i32) {
    %c1_i32 = arith.constant 1 : i32
    %0 = arith.muli %arg0, %c1_i32 : i32
    %1 = arith.addi %0, %arg1 : i32
    %c0_i32 = arith.constant 0 : i32
    %2 = arith.minsi %1, %c0_i32 : i32
    %c0_i32_0 = arith.constant 0 : i32
    %c0_i32_1 = arith.constant 0 : i32
    return %2, %c0_i32_0 : i32, i32
  }
  func.func @transform_1(%arg0: i32, %arg1: i32) -> (i32, i32) {
    %c1_i32 = arith.constant 1 : i32
    %0 = arith.muli %arg0, %c1_i32 : i32
    %1 = arith.addi %0, %arg1 : i32
    %c0_i32 = arith.constant 0 : i32
    %2 = arith.minsi %1, %c0_i32 : i32
    %c0_i32_0 = arith.constant 0 : i32
    %c0_i32_1 = arith.constant 0 : i32
    return %2, %c0_i32_0 : i32, i32
  }
  func.func @transform_2(%arg0: i32, %arg1: i32) -> (i32, i32) {
    %c1_i32 = arith.constant 1 : i32
    %0 = arith.muli %arg0, %c1_i32 : i32
    %1 = arith.addi %0, %arg1 : i32
    %c0_i32 = arith.constant 0 : i32
    %2 = arith.minsi %1, %c0_i32 : i32
    %c0_i32_0 = arith.constant 0 : i32
    %c0_i32_1 = arith.constant 0 : i32
    return %2, %c0_i32_0 : i32, i32
  }
  func.func @transform_3(%arg0: i32, %arg1: i32) -> (i32, i32) {
    %c0_i32 = arith.constant 0 : i32
    %c0_i32_0 = arith.constant 0 : i32
    return %arg0, %c0_i32 : i32, i32
  }
  func.func @transform_4(%arg0: i32, %arg1: i32) -> (i32, i32) {
    %c0_i32 = arith.constant 0 : i32
    %c0_i32_0 = arith.constant 0 : i32
    return %arg0, %c0_i32 : i32, i32
  }
  func.func @transform_5(%arg0: i32, %arg1: i32) -> (i32, i32) {
    %c0_i32 = arith.constant 0 : i32
    %c0_i32_0 = arith.constant 0 : i32
    return %arg0, %c0_i32 : i32, i32
  }
  func.func @transform_6(%arg0: i32, %arg1: i32) -> (i32, i32) {
    %c0_i32 = arith.constant 0 : i32
    %c0_i32_0 = arith.constant 0 : i32
    return %arg0, %c0_i32 : i32, i32
  }
  func.func @transform_7(%arg0: i32, %arg1: i32) -> (i32, i32) {
    %c0_i32 = arith.constant 0 : i32
    %c0_i32_0 = arith.constant 0 : i32
    return %arg0, %c0_i32 : i32, i32
  }
}

</mosaic_0001>

<llo_original>
// kernel: tpu_custom_call.1
$region0: #{tpu_custom_call.1}
  #allocation0 [shape = 'u32[]', space=smem, size = 0x4, offset = 0x4, fixed_abs, tag = 'smem constant byte address 0x4 - core index']
  #allocation1 [shape = 'u32[144,128]{1,0:T(1,128)}', space=vmem, size = 0x12000, scoped, tag = 'internal scratch']
  %s0 = inlined_call_operand.hbm [shape: f32[8,128], index: 0, kind: input, shape index: {}]
  %s1 = inlined_call_operand.hbm [shape: f32[8,128], index: 1, kind: input, shape index: {}]
  %s2 = inlined_call_operand.hbm [shape: f32[8,128], index: 2, kind: input, shape index: {}]
  %s3 = inlined_call_operand.hbm [shape: f32[8,128], index: 3, kind: output, shape index: {0}]
  %s4 = inlined_call_operand.hbm [shape: f32[8,128], index: 4, kind: output, shape index: {1}]
  %s5 = inlined_call_operand.hbm [shape: f32[8,128], index: 5, kind: output, shape index: {2}]
  %s6 = inlined_call_operand.hbm [shape: f32[8,128], index: 6, kind: output, shape index: {3}]
  %s7 = inlined_call_operand.hbm [shape: f32[8,128], index: 7, kind: output, shape index: {4}]
  %8 = xla_tuple %s3, %s4, %s5, %s6, %s7
  %s9 = sld [smem:[#allocation0]]
  $region78: #{tpu_custom_call.1} parent=0
    _
  %s11 = ssub.s32 1, %s9
  %s12 = scalar_select 0, %s11, %s9
  $region1: #{tpu_custom_call.1} parent=0
    #allocation2 [shape = 'u8[4096]{0}', space=vmem, size = 0x1000, scoped, tag = 'input window, operand 0, single buffered']
    #allocation3 [shape = 's32[1]{0}', space=sflag, size = 0x4, scoped, tag = 'scoped memory for tpu_custom_call.1']
    #allocation4 [shape = 's32[1]{0}', space=sflag, size = 0x4, scoped, tag = 'scoped memory for tpu_custom_call.1']
    #allocation5 [shape = 'u8[4096]{0}', space=vmem, size = 0x1000, scoped, tag = 'input window, operand 1, single buffered']
    #allocation6 [shape = 's32[1]{0}', space=sflag, size = 0x4, scoped, tag = 'scoped memory for tpu_custom_call.1']
    #allocation7 [shape = 'u8[4096]{0}', space=vmem, size = 0x1000, scoped, tag = 'input window, operand 2, single buffered']
    #allocation8 [shape = 'u8[4096]{0}', space=vmem, size = 0x1000, scoped, tag = 'output window, operand 0, single buffered']
    #allocation9 [shape = 'u8[4096]{0}', space=vmem, size = 0x1000, scoped, tag = 'output window, operand 1, single buffered']
    #allocation10 [shape = 's32[1]{0}', space=sflag, size = 0x4, scoped, tag = 'scoped memory for tpu_custom_call.1']
    #allocation11 [shape = 'u8[4096]{0}', space=vmem, size = 0x1000, scoped, tag = 'output window, operand 2, single buffered']
    #allocation12 [shape = 'u8[4096]{0}', space=vmem, size = 0x1000, scoped, tag = 'output window, operand 3, single buffered']
    #allocation13 [shape = 's32[1]{0}', space=sflag, size = 0x4, scoped, tag = 'scoped memory for tpu_custom_call.1']
    #allocation14 [shape = 'u8[4096]{0}', space=vmem, size = 0x1000, scoped, tag = 'output window, operand 4, single buffered']
    %13 = vsyncpa [#allocation3], 0
    %14 = vsyncpa [#allocation6], 0
    %15 = vsyncpa [#allocation4], 0
    %16 = vsyncpa [#allocation10], 0
    %17 = vsyncpa [#allocation13], 0
    // Predicated region
    $region2: #{tpu_custom_call.1} parent=1 // pred_check
      _
    $region3: #{tpu_custom_call.1} parent=1 // pred_check_branch
      %19 = sbr.rel (0) target = $region5
    $region4: #{tpu_custom_call.1} parent=1 // pred_region
      %s20 = sadd.s32 0, 0
      %p21 = scmp.lt.s32.totalorder %s20, 0
      %s22 = scalar_select %p21, %s20, 0
      %s24 = ssub.s32 128, 128
      %25 = vsyncadd [#allocation3], %s24
      %s26 = smul.addr %s22, 128
      %s27 = scalar_lea.hbm %s0, %s26
      %s29 = sshll.u32 [#allocation2], 4
      %s30 = int_to_ptr.vmem [resolvable:$true] %s29
      %32 = dma.hbm_to_vmem [thread:$0]  %s27, 128, %s30, [#allocation3]
    $region5: #{tpu_custom_call.1} parent=1 // pred_fallthru
      _
    // Predicated region
    $region6: #{tpu_custom_call.1} parent=1 // pred_check
      _
    $region7: #{tpu_custom_call.1} parent=1 // pred_check_branch
      %34 = sbr.rel (0) target = $region9
    $region8: #{tpu_custom_call.1} parent=1 // pred_region
      %s35 = sadd.s32 0, 0
      %p36 = scmp.lt.s32.totalorder %s35, 0
      %s37 = scalar_select %p36, %s35, 0
      %s39 = ssub.s32 128, 128
      %40 = vsyncadd [#allocation6], %s39
      %s41 = smul.addr %s37, 128
      %s42 = scalar_lea.hbm %s1, %s41
      %s44 = sshll.u32 [#allocation5], 4
      %s45 = int_to_ptr.vmem [resolvable:$true] %s44
      %47 = dma.hbm_to_vmem [thread:$0]  %s42, 128, %s45, [#allocation6]
    $region9: #{tpu_custom_call.1} parent=1 // pred_fallthru
      _
    // Predicated region
    $region10: #{tpu_custom_call.1} parent=1 // pred_check
      _
    $region11: #{tpu_custom_call.1} parent=1 // pred_check_branch
      %49 = sbr.rel (0) target = $region13
    $region12: #{tpu_custom_call.1} parent=1 // pred_region
      %s50 = sadd.s32 0, 0
      %p51 = scmp.lt.s32.totalorder %s50, 0
      %s52 = scalar_select %p51, %s50, 0
      %s54 = ssub.s32 128, 128
      %55 = vsyncadd [#allocation6], %s54
      %s56 = smul.addr %s52, 128
      %s57 = scalar_lea.hbm %s2, %s56
      %s59 = sshll.u32 [#allocation7], 4
      %s60 = int_to_ptr.vmem [resolvable:$true] %s59
      %62 = dma.hbm_to_vmem [thread:$0]  %s57, 128, %s60, [#allocation6]
    $region13: #{tpu_custom_call.1} parent=1 // pred_fallthru
      _
    // Predicated region
    $region14: #{tpu_custom_call.1} parent=1 // pred_check
      _
    $region15: #{tpu_custom_call.1} parent=1 // pred_check_branch
      %64 = sbr.rel (0) target = $region17
    $region16: #{tpu_custom_call.1} parent=1 // pred_region
      %65 = dma.done [#allocation3], 128
    $region17: #{tpu_custom_call.1} parent=1 // pred_fallthru
      _
    // Predicated region
    $region18: #{tpu_custom_call.1} parent=1 // pred_check
      _
    $region19: #{tpu_custom_call.1} parent=1 // pred_check_branch
      %67 = sbr.rel (0) target = $region21
    $region20: #{tpu_custom_call.1} parent=1 // pred_region
      %68 = dma.done [#allocation6], 128
    $region21: #{tpu_custom_call.1} parent=1 // pred_fallthru
      _
    // Predicated region
    $region22: #{tpu_custom_call.1} parent=1 // pred_check
      _
    $region23: #{tpu_custom_call.1} parent=1 // pred_check_branch
      %70 = sbr.rel (0) target = $region25
    $region24: #{tpu_custom_call.1} parent=1 // pred_region
      %71 = dma.done [#allocation6], 128
    $region25: #{tpu_custom_call.1} parent=1 // pred_fallthru
      _
    %s72 = sadd.s32 0, 0
    %p73 = scmp.lt.s32.totalorder %s72, 0
    %s74 = scalar_select %p73, %s72, 0
    %s75 = sadd.s32 0, 0
    %p76 = scmp.lt.s32.totalorder %s75, 0
    %s77 = scalar_select %p76, %s75, 0
    %s78 = sadd.s32 0, 0
    %p79 = scmp.lt.s32.totalorder %s78, 0
    %s80 = scalar_select %p79, %s78, 0
    %p81 = scmp.eq.s32.totalorder 0, 0
    // Predicated region
    $region26: #{tpu_custom_call.1} parent=1 // pred_check
      %p82 = pneg %p81
    $region27: #{tpu_custom_call.1} parent=1 // pred_check_branch
      %84 = sbr.rel (%p82) target = $region29
    $region28: #{tpu_custom_call.1} parent=1 // pred_region
      %85 = vst [vmem:[#allocation8] sm:$0xff] 0.0
      %86 = vst [vmem:[#allocation9] sm:$0xff] inf
      %87 = vst [vmem:[#allocation11] sm:$0xff] -inf
      %88 = vst [vmem:[#allocation12] sm:$0xff] inf
      %89 = vst [vmem:[#allocation14] sm:$0xff] -inf
    $region29: #{tpu_custom_call.1} parent=1 // pred_fallthru
      _
    %s90 = sadd.s32 0, 0
    %s91 = smul.u32 %s90, 8
    %s92 = sadd.s32 %s91, 8
    %s93 = smul.u32 %s92, 128
    %p94 = scmp.gt.s32.totalorder %s93, 512
    // Predicated region
    $region30: #{tpu_custom_call.1} parent=1 // pred_check
      %p95 = pneg %p94
    $region31: #{tpu_custom_call.1} parent=1 // pred_check_branch
      %97 = sbr.rel (%p95) target = $region33
    $region32: #{tpu_custom_call.1} parent=1 // pred_region
      %v98 = vld [vmem:[#allocation2] sm:$0xff]
      %v99 = vld [vmem:[#allocation5] sm:$0xff]
      %v100 = vld [vmem:[#allocation7] sm:$0xff]
      %v101 = vlaneseq
      %v102 = vshrl.u32 %v101, 7
      %v103 = vstv %s91
      %v104 = vadd.s32 %v103, %v102
      %v105 = vlaneseq
      %v106 = vand.u32 %v105, 127
      %v107 = vmul.u32 %v104, 128
      %v108 = vadd.s32 %v107, %v106
      %vm109 = vcmp.lt.s32.totalorder %v108, 512
      %v110 = vsub.f32 %v98, %v99
      %v111 = vsel %vm109, %v110, 0.0
      %v112 = vsel %vm109, %v99, inf
      %v113 = vsel %vm109, %v99, -inf
      %v114 = vsel %vm109, %v100, inf
      %v115 = vsel %vm109, %v100, -inf
      %v116 = vmul.f32 %v111, %v111
      %v117 = vadd.f32 %v116, 0.0
      %v118 = vadd.f32 %v117, 0.0
      %v119 = vld [vmem:[#allocation8] sm:$0xff]
      %v120 = vadd.f32 %v119, %v118
      %121 = vst [vmem:[#allocation8] sm:$0xff] %v120
      %v122 = vld [vmem:[#allocation9] sm:$0xff]
      %v123 = vmin.f32 %v122, %v112
      %124 = vst [vmem:[#allocation9] sm:$0xff] %v123
      %v125 = vld [vmem:[#allocation11] sm:$0xff]
      %v126 = vmax.f32 %v125, %v113
      %127 = vst [vmem:[#allocation11] sm:$0xff] %v126
      %v128 = vld [vmem:[#allocation12] sm:$0xff]
      %v129 = vmin.f32 %v128, %v114
      %130 = vst [vmem:[#allocation12] sm:$0xff] %v129
      %v131 = vld [vmem:[#allocation14] sm:$0xff]
      %v132 = vmax.f32 %v131, %v115
      %133 = vst [vmem:[#allocation14] sm:$0xff] %v132
    $region33: #{tpu_custom_call.1} parent=1 // pred_fallthru
      _
    %p134 = scmp.le.s32.totalorder %s93, 512
    // Predicated region
    $region34: #{tpu_custom_call.1} parent=1 // pred_check
      %p135 = pneg %p134
    $region35: #{tpu_custom_call.1} parent=1 // pred_check_branch
      %137 = sbr.rel (%p135) target = $region37
    $region36: #{tpu_custom_call.1} parent=1 // pred_region
      %v138 = vld [vmem:[#allocation2] sm:$0xff]
      %v139 = vld [vmem:[#allocation5] sm:$0xff]
      %v140 = vld [vmem:[#allocation7] sm:$0xff]
      %v141 = vsub.f32 %v138, %v139
      %v142 = vmul.f32 %v141, %v141
      %v143 = vadd.f32 %v142, 0.0
      %v144 = vadd.f32 %v143, 0.0
      %v145 = vld [vmem:[#allocation8] sm:$0xff]
      %v146 = vadd.f32 %v145, %v144
      %147 = vst [vmem:[#allocation8] sm:$0xff] %v146
      %v148 = vld [vmem:[#allocation9] sm:$0xff]
      %v149 = vmin.f32 %v148, %v139
      %150 = vst [vmem:[#allocation9] sm:$0xff] %v149
      %v151 = vld [vmem:[#allocation11] sm:$0xff]
      %v152 = vmax.f32 %v151, %v139
      %153 = vst [vmem:[#allocation11] sm:$0xff] %v152
      %v154 = vld [vmem:[#allocation12] sm:$0xff]
      %v155 = vmin.f32 %v154, %v140
      %156 = vst [vmem:[#allocation12] sm:$0xff] %v155
      %v157 = vld [vmem:[#allocation14] sm:$0xff]
      %v158 = vmax.f32 %v157, %v140
      %159 = vst [vmem:[#allocation14] sm:$0xff] %v158
    $region37: #{tpu_custom_call.1} parent=1 // pred_fallthru
      _
    // Predicated region
    $region38: #{tpu_custom_call.1} parent=1 // pred_check
      _
    $region39: #{tpu_custom_call.1} parent=1 // pred_check_branch
      %161 = sbr.rel (0) target = $region41
    $region40: #{tpu_custom_call.1} parent=1 // pred_region
      %s163 = ssub.s32 128, 128
      %164 = vsyncadd [#allocation4], %s163
      %s166 = sshll.u32 [#allocation8], 4
      %s167 = int_to_ptr.vmem [resolvable:$true] %s166
      %169 = dma.vmem_to_hbm [thread:$0]  %s167, 128, %s3, [#allocation4]
    $region41: #{tpu_custom_call.1} parent=1 // pred_fallthru
      _
    // Predicated region
    $region42: #{tpu_custom_call.1} parent=1 // pred_check
      _
    $region43: #{tpu_custom_call.1} parent=1 // pred_check_branch
      %171 = sbr.rel (0) target = $region45
    $region44: #{tpu_custom_call.1} parent=1 // pred_region
      %s173 = ssub.s32 128, 128
      %174 = vsyncadd [#allocation10], %s173
      %s176 = sshll.u32 [#allocation9], 4
      %s177 = int_to_ptr.vmem [resolvable:$true] %s176
      %179 = dma.vmem_to_hbm [thread:$0]  %s177, 128, %s4, [#allocation10]
    $region45: #{tpu_custom_call.1} parent=1 // pred_fallthru
      _
    // Predicated region
    $region46: #{tpu_custom_call.1} parent=1 // pred_check
      _
    $region47: #{tpu_custom_call.1} parent=1 // pred_check_branch
      %181 = sbr.rel (0) target = $region49
    $region48: #{tpu_custom_call.1} parent=1 // pred_region
      %s183 = ssub.s32 128, 128
      %184 = vsyncadd [#allocation10], %s183
      %s186 = sshll.u32 [#allocation11], 4
      %s187 = int_to_ptr.vmem [resolvable:$true] %s186
      %189 = dma.vmem_to_hbm [thread:$0]  %s187, 128, %s5, [#allocation10]
    $region49: #{tpu_custom_call.1} parent=1 // pred_fallthru
      _
    // Predicated region
    $region50: #{tpu_custom_call.1} parent=1 // pred_check
      _
    $region51: #{tpu_custom_call.1} parent=1 // pred_check_branch
      %191 = sbr.rel (0) target = $region53
    $region52: #{tpu_custom_call.1} parent=1 // pred_region
      %s193 = ssub.s32 128, 128
      %194 = vsyncadd [#allocation13], %s193
      %s196 = sshll.u32 [#allocation12], 4
      %s197 = int_to_ptr.vmem [resolvable:$true] %s196
      %199 = dma.vmem_to_hbm [thread:$0]  %s197, 128, %s6, [#allocation13]
    $region53: #{tpu_custom_call.1} parent=1 // pred_fallthru
      _
    // Predicated region
    $region54: #{tpu_custom_call.1} parent=1 // pred_check
      _
    $region55: #{tpu_custom_call.1} parent=1 // pred_check_branch
      %201 = sbr.rel (0) target = $region57
    $region56: #{tpu_custom_call.1} parent=1 // pred_region
      %s203 = ssub.s32 128, 128
      %204 = vsyncadd [#allocation13], %s203
      %s206 = sshll.u32 [#allocation14], 4
      %s207 = int_to_ptr.vmem [resolvable:$true] %s206
      %209 = dma.vmem_to_hbm [thread:$0]  %s207, 128, %s7, [#allocation13]
    $region57: #{tpu_custom_call.1} parent=1 // pred_fallthru
      _
    // Predicated region
    $region58: #{tpu_custom_call.1} parent=1 // pred_check
      _
    $region59: #{tpu_custom_call.1} parent=1 // pred_check_branch
      %211 = sbr.rel (0) target = $region61
    $region60: #{tpu_custom_call.1} parent=1 // pred_region
      %212 = dma.done [#allocation4], 128
    $region61: #{tpu_custom_call.1} parent=1 // pred_fallthru
      _
    // Predicated region
    $region62: #{tpu_custom_call.1} parent=1 // pred_check
      _
    $region63: #{tpu_custom_call.1} parent=1 // pred_check_branch
      %214 = sbr.rel (0) target = $region65
    $region64: #{tpu_custom_call.1} parent=1 // pred_region
      %215 = dma.done [#allocation10], 128
    $region65: #{tpu_custom_call.1} parent=1 // pred_fallthru
      _
    // Predicated region
    $region66: #{tpu_custom_call.1} parent=1 // pred_check
      _
    $region67: #{tpu_custom_call.1} parent=1 // pred_check_branch
      %217 = sbr.rel (0) target = $region69
    $region68: #{tpu_custom_call.1} parent=1 // pred_region
      %218 = dma.done [#allocation10], 128
    $region69: #{tpu_custom_call.1} parent=1 // pred_fallthru
      _
    // Predicated region
    $region70: #{tpu_custom_call.1} parent=1 // pred_check
      _
    $region71: #{tpu_custom_call.1} parent=1 // pred_check_branch
      %220 = sbr.rel (0) target = $region73
    $region72: #{tpu_custom_call.1} parent=1 // pred_region
      %221 = dma.done [#allocation13], 128
    $region73: #{tpu_custom_call.1} parent=1 // pred_fallthru
      _
    // Predicated region
    $region74: #{tpu_custom_call.1} parent=1 // pred_check
      _
    $region75: #{tpu_custom_call.1} parent=1 // pred_check_branch
      %223 = sbr.rel (0) target = $region77
    $region76: #{tpu_custom_call.1} parent=1 // pred_region
      %224 = dma.done [#allocation13], 128
    $region77: #{tpu_custom_call.1} parent=1 // pred_fallthru
      _
    %225 = vsyncpa [#allocation3], 1
    %226 = vsyncpa [#allocation6], 1
    %227 = vsyncpa [#allocation4], 1
    %228 = vsyncpa [#allocation10], 1
    %229 = vsyncpa [#allocation13], 1

</llo_original>
